<compile_context>
chip_gen: v5e
topology: v5e:2x2
jax: 0.10.0
libtpu: 0.0.40
codegen_flags: <defaults>
</compile_context>

<pallas_src>
import math
import functools

import numpy as np
import jax
import jax.numpy as jnp
from jax import lax
from jax.experimental import pallas as pl
from jax.experimental.pallas import tpu as pltpu


# ------------------------------ fused kernel --------------------------------

def _swa_kernel(word_ref, sent_ref, wcat_ref, bcat_ref, w3_ref, b3_ref,
                wout_ref, bout_ref, o_ref, *, batch, lw, ls, heads, d_model):
    D = d_model
    dk = D // heads

    # One lane-dense projection of every word row (all batches) through the
    # per-head-blocked [W1_h | W3_h | W2_h | W4_h] weight.
    wp = (jnp.dot(word_ref[...], wcat_ref[...],
                  preferred_element_type=jnp.float32) + bcat_ref[...])      # (B*Lw, 4D)
    # Sentence rows through w_linear3 (its own weight: no wcat column slicing).
    sp = (jnp.dot(sent_ref[...], w3_ref[...],
                  preferred_element_type=jnp.float32) + b3_ref[...])        # (B*Ls, D)

    wout = wout_ref[...]            # (D, D)  bf16
    bout = bout_ref[...]            # (1, D)  f32

    dn = (((1,), (1,)), ((), ()))   # contract last dims of both: x @ y^T

    # Static unrolled loops: B and H are tiny here.
    # TODO(synk): for production-size Lw/D/heads, bound liveness with a
    # lax.fori_loop over heads (or a grid axis) instead of full unrolling.
    for b in range(batch):
        wp_b = wp[b * lw:(b + 1) * lw, :]
        sp_b = sp[b * ls:(b + 1) * ls, :]
        acc = jnp.zeros((lw, D), jnp.float32)
        for h in range(heads):
            base = 4 * dk * h
            # Query side [w1_h ‖ w3_h] is contiguous by weight layout.
            q = wp_b[:, base:base + 2 * dk].astype(jnp.bfloat16)            # (Lw, 2dk)
            # Key side [w2_h ‖ s_h].
            k = jnp.concatenate(
                [wp_b[:, base + 2 * dk:base + 3 * dk],
                 sp_b[:, h * dk:(h + 1) * dk]], axis=-1).astype(jnp.bfloat16)   # (Ls, 2dk)
            v = wp_b[:, base + 3 * dk:base + 4 * dk].astype(jnp.bfloat16)   # (Lw, dk)

            # Fused scores = w1 w2^T + w3 s^T in a single MXU call
            # (reference applies no 1/sqrt(dk) scaling).
            scores = lax.dot_general(q, k, dn, preferred_element_type=jnp.float32)
            m = jnp.max(scores, axis=-1, keepdims=True)
            e = jnp.exp(scores - m)
            p = e * pl.reciprocal(jnp.sum(e, axis=-1, keepdims=True), approx=False)
            # dropout(p) is the identity in eval mode.
            attn = jnp.dot(p.astype(jnp.bfloat16), v,
                           preferred_element_type=jnp.float32)               # (Lw, dk)
            # Head-concat + output projection folded into per-head accumulation.
            acc = acc + jnp.dot(attn.astype(jnp.bfloat16),
                                wout[h * dk:(h + 1) * dk, :],
                                preferred_element_type=jnp.float32)
        o_ref[b * lw:(b + 1) * lw, :] = acc + bout


# --------------------------------- wrapper ----------------------------------

def _per_head_blocks(mats, heads):
    """Column-concatenate `mats` (each (R, D)) so that for each head h the
    output columns are [mats[0]_h | mats[1]_h | ...], each block d_k wide."""
    r, d = mats[0].shape
    dk = d // heads
    stacked = jnp.concatenate([m.reshape(r, heads, dk) for m in mats], axis=-1)
    return stacked.reshape(r, len(mats) * d)


def sentence_word_attention(params, word, sent, heads):
    B, Lw, D = word.shape
    Bs, Ls, Ds = sent.shape
    assert B == Bs and D == Ds
    assert Lw == Ls          # reference adds (Lw,Lw) and (Lw,Ls) score matrices
    assert D % heads == 0
    dk = D // heads

    # Per-head-contiguous fused weight: columns of head h = [W1_h|W3_h|W2_h|W4_h].
    wcat = _per_head_blocks([params["w1_w"], params["w3_w"],
                             params["w2_w"], params["w4_w"]], heads)
    bcat = _per_head_blocks([params["w1_b"], params["w3_b"],
                             params["w2_b"], params["w4_b"]], heads)

    # bf16 matmul operands; biases / accumulation stay f32.
    word2d = word.reshape(B * Lw, D).astype(jnp.bfloat16)
    sent2d = sent.reshape(B * Ls, D).astype(jnp.bfloat16)
    wcat = wcat.astype(jnp.bfloat16)
    w3 = params["w3_w"].astype(jnp.bfloat16)
    wout = params["out_w"].astype(jnp.bfloat16)
    bcat = bcat.astype(jnp.float32)
    b3 = params["w3_b"].astype(jnp.float32)
    bout = params["out_b"].astype(jnp.float32)

    flops = int(2 * (B * Lw) * D * (4 * D)             # word projection
                + 2 * (B * Ls) * D * D                 # sentence projection
                + 2 * B * heads * Lw * Ls * (2 * dk)   # fused score matmul
                + 2 * B * heads * Lw * Ls * dk         # p @ v
                + 2 * B * heads * Lw * dk * D)         # per-head output proj
    transcendentals = int(B * heads * Lw * Ls + B * heads * Lw)
    bytes_accessed = int(2 * (word2d.size + sent2d.size + wcat.size
                              + w3.size + wout.size)
                         + 4 * (bcat.size + b3.size + bout.size + B * Lw * D))

    kernel = functools.partial(_swa_kernel, batch=B, lw=Lw, ls=Ls,
                               heads=heads, d_model=D)
    out2d = pl.pallas_call(
        kernel,
        grid=(1,),   # batch folded: no per-step overhead on single-TC chips
        in_specs=[
            pl.BlockSpec((B * Lw, D), lambda i: (0, 0)),      # word  (bf16)
            pl.BlockSpec((B * Ls, D), lambda i: (0, 0)),      # sent  (bf16)
            pl.BlockSpec((D, 4 * D), lambda i: (0, 0)),       # wcat  (bf16)
            pl.BlockSpec((1, 4 * D), lambda i: (0, 0)),       # bcat  (f32)
            pl.BlockSpec((D, D), lambda i: (0, 0)),           # w3    (bf16)
            pl.BlockSpec((1, D), lambda i: (0, 0)),           # b3    (f32)
            pl.BlockSpec((D, D), lambda i: (0, 0)),           # wout  (bf16)
            pl.BlockSpec((1, D), lambda i: (0, 0)),           # bout  (f32)
        ],
        out_specs=pl.BlockSpec((B * Lw, D), lambda i: (0, 0)),
        out_shape=jax.ShapeDtypeStruct((B * Lw, D), jnp.float32),
        compiler_params=pltpu.CompilerParams(
            dimension_semantics=("arbitrary",)),
        cost_estimate=pl.CostEstimate(flops=flops,
                                      transcendentals=transcendentals,
                                      bytes_accessed=bytes_accessed),
    )(word2d, sent2d, wcat, bcat, w3, b3, wout, bout)
    return out2d.reshape(B, Lw, D)


# ----------------------------- pure-JAX reference ---------------------------

def reference(params, word, sent, heads):
    B, Lw, D = word.shape
    dk = D // heads

    def lin(x, w, b):
        return x @ w + b

    def split(x, L):
        return x.reshape(B, L, heads, dk).transpose(0, 2, 1, 3)

    w1 = split(lin(word, params["w1_w"], params["w1_b"]), Lw)
    w2 = split(lin(word, params["w2_w"], params["w2_b"]), Lw)
    w3 = split(lin(word, params["w3_w"], params["w3_b"]), Lw)
    w4 = split(lin(word, params["w4_w"], params["w4_b"]), Lw)
    s = split(lin(sent, params["w3_w"], params["w3_b"]), sent.shape[1])

    scores = (jnp.einsum("bhqd,bhkd->bhqk", w1, w2)
              + jnp.einsum("bhqd,bhkd->bhqk", w3, s))
    p = jax.nn.softmax(scores, axis=-1)
    out = jnp.einsum("bhqk,bhkd->bhqd", p, w4).transpose(0, 2, 1, 3).reshape(B, Lw, D)
    return out @ params["out_w"] + params["out_b"]


# --------------------------- parameter initialization -----------------------

def _init_linear(key, din, dout):
    k1, k2 = jax.random.split(key)
    bound = 1.0 / math.sqrt(din)
    w = jax.random.uniform(k1, (din, dout), jnp.float32, -bound, bound)
    b = jax.random.uniform(k2, (1, dout), jnp.float32, -bound, bound)
    return w, b


def init_params(key, d):
    keys = jax.random.split(key, 5)
    params = {}
    for name, kk in zip(("w1", "w2", "w3", "w4", "out"), keys):
        w, b = _init_linear(kk, d, d)
        params[name + "_w"], params[name + "_b"] = w, b
    # s_linear3 exists in the PyTorch __init__ but is never used in forward().
    return params


# ----------------------------------- main ------------------------------------

if __name__ == "__main__":
    B, Lw, Ls, D, H = 2, 8, 8, 32, 4
    key = jax.random.PRNGKey(0)
    kp, kw, ks = jax.random.split(key, 3)

    params = init_params(kp, D)
    word = jax.random.normal(kw, (B, Lw, D), jnp.float32)
    sent = jax.random.normal(ks, (B, Ls, D), jnp.float32)

    fwd = jax.jit(functools.partial(sentence_word_attention, heads=H))
    out = fwd(params, word, sent)
    jax.block_until_ready(out)
    assert out.shape == (B, Lw, D)

    with jax.default_matmul_precision("float32"):
        ref = reference(params, word, sent, H)
    # bf16 matmul operands (f32 accumulation) -> ~1e-2-level deltas vs f32 ref.
    np.testing.assert_allclose(np.asarray(out), np.asarray(ref),
                               rtol=3e-2, atol=3e-2)
    print("KERNEL_OK")
</pallas_src>

<mosaic_0001>
module attributes {stable_mosaic.version = 11 : i64} {
  func.func @_swa_kernel(%arg0: i32, %arg1: memref<16x32xbf16, #tpu.memory_space<vmem>>, %arg2: memref<16x32xbf16, #tpu.memory_space<vmem>>, %arg3: memref<32x128xbf16, #tpu.memory_space<vmem>>, %arg4: memref<1x128xf32, #tpu.memory_space<vmem>>, %arg5: memref<32x32xbf16, #tpu.memory_space<vmem>>, %arg6: memref<1x32xf32, #tpu.memory_space<vmem>>, %arg7: memref<32x32xbf16, #tpu.memory_space<vmem>>, %arg8: memref<1x32xf32, #tpu.memory_space<vmem>>, %arg9: memref<16x32xf32, #tpu.memory_space<vmem>>) attributes {dimension_semantics = [#tpu.dimension_semantics<arbitrary>], iteration_bounds = array<i64: 1>, scalar_prefetch = 0 : i64, scratch_operands = 0 : i64, tpu.core_type = #tpu.core_type<tc>, window_params = [{pipeline_mode = #tpu.pipeline_mode<synchronous>, transform_indices = @transform_0, window_bounds = array<i64: 16, 32>}, {pipeline_mode = #tpu.pipeline_mode<synchronous>, transform_indices = @transform_1, window_bounds = array<i64: 16, 32>}, {pipeline_mode = #tpu.pipeline_mode<synchronous>, transform_indices = @transform_2, window_bounds = array<i64: 32, 128>}, {pipeline_mode = #tpu.pipeline_mode<synchronous>, transform_indices = @transform_3, window_bounds = array<i64: 1, 128>}, {pipeline_mode = #tpu.pipeline_mode<synchronous>, transform_indices = @transform_4, window_bounds = array<i64: 32, 32>}, {pipeline_mode = #tpu.pipeline_mode<synchronous>, transform_indices = @transform_5, window_bounds = array<i64: 1, 32>}, {pipeline_mode = #tpu.pipeline_mode<synchronous>, transform_indices = @transform_6, window_bounds = array<i64: 32, 32>}, {pipeline_mode = #tpu.pipeline_mode<synchronous>, transform_indices = @transform_7, window_bounds = array<i64: 1, 32>}, {pipeline_mode = #tpu.pipeline_mode<synchronous>, transform_indices = @transform_8, window_bounds = array<i64: 16, 32>}]} {
    %c0 = arith.constant 0 : index
    %c0_0 = arith.constant 0 : index
    %0 = vector.load %arg1[%c0, %c0_0] : memref<16x32xbf16, #tpu.memory_space<vmem>>, vector<16x32xbf16>
    %c0_1 = arith.constant 0 : index
    %c0_2 = arith.constant 0 : index
    %1 = vector.load %arg3[%c0_1, %c0_2] : memref<32x128xbf16, #tpu.memory_space<vmem>>, vector<32x128xbf16>
    %cst = arith.constant dense<0.000000e+00> : vector<16x128xf32>
    %2 = tpu.matmul %0, %1, %cst {dimension_numbers = #tpu.dot_dimension_numbers<[1], [0], [0], [1], [0, 0, 1, 1], [], []>} : vector<16x32xbf16>, vector<32x128xbf16>, vector<16x128xf32> -> vector<16x128xf32>
    %c0_3 = arith.constant 0 : index
    %c0_4 = arith.constant 0 : index
    %3 = vector.load %arg4[%c0_3, %c0_4] : memref<1x128xf32, #tpu.memory_space<vmem>>, vector<1x128xf32>
    %4 = vector.broadcast %3 : vector<1x128xf32> to vector<16x128xf32>
    %5 = arith.addf %2, %4 : vector<16x128xf32>
    %c0_5 = arith.constant 0 : index
    %c0_6 = arith.constant 0 : index
    %6 = vector.load %arg2[%c0_5, %c0_6] : memref<16x32xbf16, #tpu.memory_space<vmem>>, vector<16x32xbf16>
    %c0_7 = arith.constant 0 : index
    %c0_8 = arith.constant 0 : index
    %7 = vector.load %arg5[%c0_7, %c0_8] : memref<32x32xbf16, #tpu.memory_space<vmem>>, vector<32x32xbf16>
    %cst_9 = arith.constant dense<0.000000e+00> : vector<16x32xf32>
    %8 = tpu.matmul %6, %7, %cst_9 {dimension_numbers = #tpu.dot_dimension_numbers<[1], [0], [0], [1], [0, 0, 1, 1], [], []>} : vector<16x32xbf16>, vector<32x32xbf16>, vector<16x32xf32> -> vector<16x32xf32>
    %c0_10 = arith.constant 0 : index
    %c0_11 = arith.constant 0 : index
    %9 = vector.load %arg6[%c0_10, %c0_11] : memref<1x32xf32, #tpu.memory_space<vmem>>, vector<1x32xf32>
    %10 = vector.broadcast %9 : vector<1x32xf32> to vector<16x32xf32>
    %11 = arith.addf %8, %10 : vector<16x32xf32>
    %c0_12 = arith.constant 0 : index
    %c0_13 = arith.constant 0 : index
    %12 = vector.load %arg7[%c0_12, %c0_13] : memref<32x32xbf16, #tpu.memory_space<vmem>>, vector<32x32xbf16>
    %c0_14 = arith.constant 0 : index
    %c0_15 = arith.constant 0 : index
    %13 = vector.load %arg8[%c0_14, %c0_15] : memref<1x32xf32, #tpu.memory_space<vmem>>, vector<1x32xf32>
    %14 = vector.extract_strided_slice %5 {offsets = [0, 0], sizes = [8, 128], strides = [1, 1]} : vector<16x128xf32> to vector<8x128xf32>
    %15 = vector.extract_strided_slice %11 {offsets = [0, 0], sizes = [8, 32], strides = [1, 1]} : vector<16x32xf32> to vector<8x32xf32>
    %cst_16 = arith.constant 0.000000e+00 : f32
    %16 = vector.broadcast %cst_16 : f32 to vector<8x32xf32>
    %17 = vector.extract_strided_slice %14 {offsets = [0, 0], sizes = [8, 16], strides = [1, 1]} : vector<8x128xf32> to vector<8x16xf32>
    %18 = arith.truncf %17 : vector<8x16xf32> to vector<8x16xbf16>
    %19 = vector.extract_strided_slice %14 {offsets = [0, 16], sizes = [8, 8], strides = [1, 1]} : vector<8x128xf32> to vector<8x8xf32>
    %20 = vector.extract_strided_slice %15 {offsets = [0, 0], sizes = [8, 8], strides = [1, 1]} : vector<8x32xf32> to vector<8x8xf32>
    %21 = tpu.concatenate %19, %20 in 1 : vector<8x8xf32>, vector<8x8xf32> -> vector<8x16xf32>
    %22 = arith.truncf %21 : vector<8x16xf32> to vector<8x16xbf16>
    %23 = vector.extract_strided_slice %14 {offsets = [0, 24], sizes = [8, 8], strides = [1, 1]} : vector<8x128xf32> to vector<8x8xf32>
    %24 = arith.truncf %23 : vector<8x8xf32> to vector<8x8xbf16>
    %cst_17 = arith.constant dense<0.000000e+00> : vector<8x8xf32>
    %25 = tpu.matmul %18, %22, %cst_17 {dimension_numbers = #tpu.dot_dimension_numbers<[1], [1], [0], [0], [0, 0, 1, 0], [], []>} : vector<8x16xbf16>, vector<8x16xbf16>, vector<8x8xf32> -> vector<8x8xf32>
    %cst_18 = arith.constant dense<0xFF800000> : vector<8xf32>
    %26 = vector.multi_reduction <maximumf>, %25, %cst_18 [1] : vector<8x8xf32> to vector<8xf32>
    %27 = vector.shape_cast %26 : vector<8xf32> to vector<8x1xf32>
    %28 = vector.broadcast %27 : vector<8x1xf32> to vector<8x8xf32>
    %29 = arith.subf %25, %28 : vector<8x8xf32>
    %30 = math.exp %29 : vector<8x8xf32>
    %cst_19 = arith.constant dense<0.000000e+00> : vector<8xf32>
    %31 = vector.multi_reduction <add>, %30, %cst_19 [1] : vector<8x8xf32> to vector<8xf32>
    %32 = vector.shape_cast %31 : vector<8xf32> to vector<8x1xf32>
    %33 = tpu.reciprocal %32 : vector<8x1xf32> -> vector<8x1xf32>
    %34 = vector.broadcast %33 : vector<8x1xf32> to vector<8x8xf32>
    %35 = arith.mulf %30, %34 : vector<8x8xf32>
    %36 = arith.truncf %35 : vector<8x8xf32> to vector<8x8xbf16>
    %cst_20 = arith.constant dense<0.000000e+00> : vector<8x8xf32>
    %37 = tpu.matmul %36, %24, %cst_20 {dimension_numbers = #tpu.dot_dimension_numbers<[1], [0], [0], [1], [0, 0, 1, 1], [], []>} : vector<8x8xbf16>, vector<8x8xbf16>, vector<8x8xf32> -> vector<8x8xf32>
    %38 = arith.truncf %37 : vector<8x8xf32> to vector<8x8xbf16>
    %39 = vector.extract_strided_slice %12 {offsets = [0, 0], sizes = [8, 32], strides = [1, 1]} : vector<32x32xbf16> to vector<8x32xbf16>
    %cst_21 = arith.constant dense<0.000000e+00> : vector<8x32xf32>
    %40 = tpu.matmul %38, %39, %cst_21 {dimension_numbers = #tpu.dot_dimension_numbers<[1], [0], [0], [1], [0, 0, 1, 1], [], []>} : vector<8x8xbf16>, vector<8x32xbf16>, vector<8x32xf32> -> vector<8x32xf32>
    %41 = arith.addf %16, %40 : vector<8x32xf32>
    %42 = vector.extract_strided_slice %14 {offsets = [0, 32], sizes = [8, 16], strides = [1, 1]} : vector<8x128xf32> to vector<8x16xf32>
    %43 = arith.truncf %42 : vector<8x16xf32> to vector<8x16xbf16>
    %44 = vector.extract_strided_slice %14 {offsets = [0, 48], sizes = [8, 8], strides = [1, 1]} : vector<8x128xf32> to vector<8x8xf32>
    %45 = vector.extract_strided_slice %15 {offsets = [0, 8], sizes = [8, 8], strides = [1, 1]} : vector<8x32xf32> to vector<8x8xf32>
    %46 = tpu.concatenate %44, %45 in 1 : vector<8x8xf32>, vector<8x8xf32> -> vector<8x16xf32>
    %47 = arith.truncf %46 : vector<8x16xf32> to vector<8x16xbf16>
    %48 = vector.extract_strided_slice %14 {offsets = [0, 56], sizes = [8, 8], strides = [1, 1]} : vector<8x128xf32> to vector<8x8xf32>
    %49 = arith.truncf %48 : vector<8x8xf32> to vector<8x8xbf16>
    %cst_22 = arith.constant dense<0.000000e+00> : vector<8x8xf32>
    %50 = tpu.matmul %43, %47, %cst_22 {dimension_numbers = #tpu.dot_dimension_numbers<[1], [1], [0], [0], [0, 0, 1, 0], [], []>} : vector<8x16xbf16>, vector<8x16xbf16>, vector<8x8xf32> -> vector<8x8xf32>
    %cst_23 = arith.constant dense<0xFF800000> : vector<8xf32>
    %51 = vector.multi_reduction <maximumf>, %50, %cst_23 [1] : vector<8x8xf32> to vector<8xf32>
    %52 = vector.shape_cast %51 : vector<8xf32> to vector<8x1xf32>
    %53 = vector.broadcast %52 : vector<8x1xf32> to vector<8x8xf32>
    %54 = arith.subf %50, %53 : vector<8x8xf32>
    %55 = math.exp %54 : vector<8x8xf32>
    %cst_24 = arith.constant dense<0.000000e+00> : vector<8xf32>
    %56 = vector.multi_reduction <add>, %55, %cst_24 [1] : vector<8x8xf32> to vector<8xf32>
    %57 = vector.shape_cast %56 : vector<8xf32> to vector<8x1xf32>
    %58 = tpu.reciprocal %57 : vector<8x1xf32> -> vector<8x1xf32>
    %59 = vector.broadcast %58 : vector<8x1xf32> to vector<8x8xf32>
    %60 = arith.mulf %55, %59 : vector<8x8xf32>
    %61 = arith.truncf %60 : vector<8x8xf32> to vector<8x8xbf16>
    %cst_25 = arith.constant dense<0.000000e+00> : vector<8x8xf32>
    %62 = tpu.matmul %61, %49, %cst_25 {dimension_numbers = #tpu.dot_dimension_numbers<[1], [0], [0], [1], [0, 0, 1, 1], [], []>} : vector<8x8xbf16>, vector<8x8xbf16>, vector<8x8xf32> -> vector<8x8xf32>
    %63 = arith.truncf %62 : vector<8x8xf32> to vector<8x8xbf16>
    %64 = vector.extract_strided_slice %12 {offsets = [8, 0], sizes = [8, 32], strides = [1, 1]} : vector<32x32xbf16> to vector<8x32xbf16>
    %cst_26 = arith.constant dense<0.000000e+00> : vector<8x32xf32>
    %65 = tpu.matmul %63, %64, %cst_26 {dimension_numbers = #tpu.dot_dimension_numbers<[1], [0], [0], [1], [0, 0, 1, 1], [], []>} : vector<8x8xbf16>, vector<8x32xbf16>, vector<8x32xf32> -> vector<8x32xf32>
    %66 = arith.addf %41, %65 : vector<8x32xf32>
    %67 = vector.extract_strided_slice %14 {offsets = [0, 64], sizes = [8, 16], strides = [1, 1]} : vector<8x128xf32> to vector<8x16xf32>
    %68 = arith.truncf %67 : vector<8x16xf32> to vector<8x16xbf16>
    %69 = vector.extract_strided_slice %14 {offsets = [0, 80], sizes = [8, 8], strides = [1, 1]} : vector<8x128xf32> to vector<8x8xf32>
    %70 = vector.extract_strided_slice %15 {offsets = [0, 16], sizes = [8, 8], strides = [1, 1]} : vector<8x32xf32> to vector<8x8xf32>
    %71 = tpu.concatenate %69, %70 in 1 : vector<8x8xf32>, vector<8x8xf32> -> vector<8x16xf32>
    %72 = arith.truncf %71 : vector<8x16xf32> to vector<8x16xbf16>
    %73 = vector.extract_strided_slice %14 {offsets = [0, 88], sizes = [8, 8], strides = [1, 1]} : vector<8x128xf32> to vector<8x8xf32>
    %74 = arith.truncf %73 : vector<8x8xf32> to vector<8x8xbf16>
    %cst_27 = arith.constant dense<0.000000e+00> : vector<8x8xf32>
    %75 = tpu.matmul %68, %72, %cst_27 {dimension_numbers = #tpu.dot_dimension_numbers<[1], [1], [0], [0], [0, 0, 1, 0], [], []>} : vector<8x16xbf16>, vector<8x16xbf16>, vector<8x8xf32> -> vector<8x8xf32>
    %cst_28 = arith.constant dense<0xFF800000> : vector<8xf32>
    %76 = vector.multi_reduction <maximumf>, %75, %cst_28 [1] : vector<8x8xf32> to vector<8xf32>
    %77 = vector.shape_cast %76 : vector<8xf32> to vector<8x1xf32>
    %78 = vector.broadcast %77 : vector<8x1xf32> to vector<8x8xf32>
    %79 = arith.subf %75, %78 : vector<8x8xf32>
    %80 = math.exp %79 : vector<8x8xf32>
    %cst_29 = arith.constant dense<0.000000e+00> : vector<8xf32>
    %81 = vector.multi_reduction <add>, %80, %cst_29 [1] : vector<8x8xf32> to vector<8xf32>
    %82 = vector.shape_cast %81 : vector<8xf32> to vector<8x1xf32>
    %83 = tpu.reciprocal %82 : vector<8x1xf32> -> vector<8x1xf32>
    %84 = vector.broadcast %83 : vector<8x1xf32> to vector<8x8xf32>
    %85 = arith.mulf %80, %84 : vector<8x8xf32>
    %86 = arith.truncf %85 : vector<8x8xf32> to vector<8x8xbf16>
    %cst_30 = arith.constant dense<0.000000e+00> : vector<8x8xf32>
    %87 = tpu.matmul %86, %74, %cst_30 {dimension_numbers = #tpu.dot_dimension_numbers<[1], [0], [0], [1], [0, 0, 1, 1], [], []>} : vector<8x8xbf16>, vector<8x8xbf16>, vector<8x8xf32> -> vector<8x8xf32>
    %88 = arith.truncf %87 : vector<8x8xf32> to vector<8x8xbf16>
    %89 = vector.extract_strided_slice %12 {offsets = [16, 0], sizes = [8, 32], strides = [1, 1]} : vector<32x32xbf16> to vector<8x32xbf16>
    %cst_31 = arith.constant dense<0.000000e+00> : vector<8x32xf32>
    %90 = tpu.matmul %88, %89, %cst_31 {dimension_numbers = #tpu.dot_dimension_numbers<[1], [0], [0], [1], [0, 0, 1, 1], [], []>} : vector<8x8xbf16>, vector<8x32xbf16>, vector<8x32xf32> -> vector<8x32xf32>
    %91 = arith.addf %66, %90 : vector<8x32xf32>
    %92 = vector.extract_strided_slice %14 {offsets = [0, 96], sizes = [8, 16], strides = [1, 1]} : vector<8x128xf32> to vector<8x16xf32>
    %93 = arith.truncf %92 : vector<8x16xf32> to vector<8x16xbf16>
    %94 = vector.extract_strided_slice %14 {offsets = [0, 112], sizes = [8, 8], strides = [1, 1]} : vector<8x128xf32> to vector<8x8xf32>
    %95 = vector.extract_strided_slice %15 {offsets = [0, 24], sizes = [8, 8], strides = [1, 1]} : vector<8x32xf32> to vector<8x8xf32>
    %96 = tpu.concatenate %94, %95 in 1 : vector<8x8xf32>, vector<8x8xf32> -> vector<8x16xf32>
    %97 = arith.truncf %96 : vector<8x16xf32> to vector<8x16xbf16>
    %98 = vector.extract_strided_slice %14 {offsets = [0, 120], sizes = [8, 8], strides = [1, 1]} : vector<8x128xf32> to vector<8x8xf32>
    %99 = arith.truncf %98 : vector<8x8xf32> to vector<8x8xbf16>
    %cst_32 = arith.constant dense<0.000000e+00> : vector<8x8xf32>
    %100 = tpu.matmul %93, %97, %cst_32 {dimension_numbers = #tpu.dot_dimension_numbers<[1], [1], [0], [0], [0, 0, 1, 0], [], []>} : vector<8x16xbf16>, vector<8x16xbf16>, vector<8x8xf32> -> vector<8x8xf32>
    %cst_33 = arith.constant dense<0xFF800000> : vector<8xf32>
    %101 = vector.multi_reduction <maximumf>, %100, %cst_33 [1] : vector<8x8xf32> to vector<8xf32>
    %102 = vector.shape_cast %101 : vector<8xf32> to vector<8x1xf32>
    %103 = vector.broadcast %102 : vector<8x1xf32> to vector<8x8xf32>
    %104 = arith.subf %100, %103 : vector<8x8xf32>
    %105 = math.exp %104 : vector<8x8xf32>
    %cst_34 = arith.constant dense<0.000000e+00> : vector<8xf32>
    %106 = vector.multi_reduction <add>, %105, %cst_34 [1] : vector<8x8xf32> to vector<8xf32>
    %107 = vector.shape_cast %106 : vector<8xf32> to vector<8x1xf32>
    %108 = tpu.reciprocal %107 : vector<8x1xf32> -> vector<8x1xf32>
    %109 = vector.broadcast %108 : vector<8x1xf32> to vector<8x8xf32>
    %110 = arith.mulf %105, %109 : vector<8x8xf32>
    %111 = arith.truncf %110 : vector<8x8xf32> to vector<8x8xbf16>
    %cst_35 = arith.constant dense<0.000000e+00> : vector<8x8xf32>
    %112 = tpu.matmul %111, %99, %cst_35 {dimension_numbers = #tpu.dot_dimension_numbers<[1], [0], [0], [1], [0, 0, 1, 1], [], []>} : vector<8x8xbf16>, vector<8x8xbf16>, vector<8x8xf32> -> vector<8x8xf32>
    %113 = arith.truncf %112 : vector<8x8xf32> to vector<8x8xbf16>
    %114 = vector.extract_strided_slice %12 {offsets = [24, 0], sizes = [8, 32], strides = [1, 1]} : vector<32x32xbf16> to vector<8x32xbf16>
    %cst_36 = arith.constant dense<0.000000e+00> : vector<8x32xf32>
    %115 = tpu.matmul %113, %114, %cst_36 {dimension_numbers = #tpu.dot_dimension_numbers<[1], [0], [0], [1], [0, 0, 1, 1], [], []>} : vector<8x8xbf16>, vector<8x32xbf16>, vector<8x32xf32> -> vector<8x32xf32>
    %116 = arith.addf %91, %115 : vector<8x32xf32>
    %117 = vector.broadcast %13 : vector<1x32xf32> to vector<8x32xf32>
    %118 = arith.addf %116, %117 : vector<8x32xf32>
    %c0_37 = arith.constant 0 : index
    %c0_38 = arith.constant 0 : index
    %119 = vector.load %arg9[%c0_37, %c0_38] : memref<16x32xf32, #tpu.memory_space<vmem>>, vector<8x32xf32>
    tpu.vector_store %arg9[%c0_37, %c0_38], %118 {strides = array<i32>} : memref<16x32xf32, #tpu.memory_space<vmem>>, vector<8x32xf32>,
    %120 = vector.extract_strided_slice %5 {offsets = [8, 0], sizes = [8, 128], strides = [1, 1]} : vector<16x128xf32> to vector<8x128xf32>
    %121 = vector.extract_strided_slice %11 {offsets = [8, 0], sizes = [8, 32], strides = [1, 1]} : vector<16x32xf32> to vector<8x32xf32>
    %cst_39 = arith.constant 0.000000e+00 : f32
    %122 = vector.broadcast %cst_39 : f32 to vector<8x32xf32>
    %123 = vector.extract_strided_slice %120 {offsets = [0, 0], sizes = [8, 16], strides = [1, 1]} : vector<8x128xf32> to vector<8x16xf32>
    %124 = arith.truncf %123 : vector<8x16xf32> to vector<8x16xbf16>
    %125 = vector.extract_strided_slice %120 {offsets = [0, 16], sizes = [8, 8], strides = [1, 1]} : vector<8x128xf32> to vector<8x8xf32>
    %126 = vector.extract_strided_slice %121 {offsets = [0, 0], sizes = [8, 8], strides = [1, 1]} : vector<8x32xf32> to vector<8x8xf32>
    %127 = tpu.concatenate %125, %126 in 1 : vector<8x8xf32>, vector<8x8xf32> -> vector<8x16xf32>
    %128 = arith.truncf %127 : vector<8x16xf32> to vector<8x16xbf16>
    %129 = vector.extract_strided_slice %120 {offsets = [0, 24], sizes = [8, 8], strides = [1, 1]} : vector<8x128xf32> to vector<8x8xf32>
    %130 = arith.truncf %129 : vector<8x8xf32> to vector<8x8xbf16>
    %cst_40 = arith.constant dense<0.000000e+00> : vector<8x8xf32>
    %131 = tpu.matmul %124, %128, %cst_40 {dimension_numbers = #tpu.dot_dimension_numbers<[1], [1], [0], [0], [0, 0, 1, 0], [], []>} : vector<8x16xbf16>, vector<8x16xbf16>, vector<8x8xf32> -> vector<8x8xf32>
    %cst_41 = arith.constant dense<0xFF800000> : vector<8xf32>
    %132 = vector.multi_reduction <maximumf>, %131, %cst_41 [1] : vector<8x8xf32> to vector<8xf32>
    %133 = vector.shape_cast %132 : vector<8xf32> to vector<8x1xf32>
    %134 = vector.broadcast %133 : vector<8x1xf32> to vector<8x8xf32>
    %135 = arith.subf %131, %134 : vector<8x8xf32>
    %136 = math.exp %135 : vector<8x8xf32>
    %cst_42 = arith.constant dense<0.000000e+00> : vector<8xf32>
    %137 = vector.multi_reduction <add>, %136, %cst_42 [1] : vector<8x8xf32> to vector<8xf32>
    %138 = vector.shape_cast %137 : vector<8xf32> to vector<8x1xf32>
    %139 = tpu.reciprocal %138 : vector<8x1xf32> -> vector<8x1xf32>
    %140 = vector.broadcast %139 : vector<8x1xf32> to vector<8x8xf32>
    %141 = arith.mulf %136, %140 : vector<8x8xf32>
    %142 = arith.truncf %141 : vector<8x8xf32> to vector<8x8xbf16>
    %cst_43 = arith.constant dense<0.000000e+00> : vector<8x8xf32>
    %143 = tpu.matmul %142, %130, %cst_43 {dimension_numbers = #tpu.dot_dimension_numbers<[1], [0], [0], [1], [0, 0, 1, 1], [], []>} : vector<8x8xbf16>, vector<8x8xbf16>, vector<8x8xf32> -> vector<8x8xf32>
    %144 = arith.truncf %143 : vector<8x8xf32> to vector<8x8xbf16>
    %145 = vector.extract_strided_slice %12 {offsets = [0, 0], sizes = [8, 32], strides = [1, 1]} : vector<32x32xbf16> to vector<8x32xbf16>
    %cst_44 = arith.constant dense<0.000000e+00> : vector<8x32xf32>
    %146 = tpu.matmul %144, %145, %cst_44 {dimension_numbers = #tpu.dot_dimension_numbers<[1], [0], [0], [1], [0, 0, 1, 1], [], []>} : vector<8x8xbf16>, vector<8x32xbf16>, vector<8x32xf32> -> vector<8x32xf32>
    %147 = arith.addf %122, %146 : vector<8x32xf32>
    %148 = vector.extract_strided_slice %120 {offsets = [0, 32], sizes = [8, 16], strides = [1, 1]} : vector<8x128xf32> to vector<8x16xf32>
    %149 = arith.truncf %148 : vector<8x16xf32> to vector<8x16xbf16>
    %150 = vector.extract_strided_slice %120 {offsets = [0, 48], sizes = [8, 8], strides = [1, 1]} : vector<8x128xf32> to vector<8x8xf32>
    %151 = vector.extract_strided_slice %121 {offsets = [0, 8], sizes = [8, 8], strides = [1, 1]} : vector<8x32xf32> to vector<8x8xf32>
    %152 = tpu.concatenate %150, %151 in 1 : vector<8x8xf32>, vector<8x8xf32> -> vector<8x16xf32>
    %153 = arith.truncf %152 : vector<8x16xf32> to vector<8x16xbf16>
    %154 = vector.extract_strided_slice %120 {offsets = [0, 56], sizes = [8, 8], strides = [1, 1]} : vector<8x128xf32> to vector<8x8xf32>
    %155 = arith.truncf %154 : vector<8x8xf32> to vector<8x8xbf16>
    %cst_45 = arith.constant dense<0.000000e+00> : vector<8x8xf32>
    %156 = tpu.matmul %149, %153, %cst_45 {dimension_numbers = #tpu.dot_dimension_numbers<[1], [1], [0], [0], [0, 0, 1, 0], [], []>} : vector<8x16xbf16>, vector<8x16xbf16>, vector<8x8xf32> -> vector<8x8xf32>
    %cst_46 = arith.constant dense<0xFF800000> : vector<8xf32>
    %157 = vector.multi_reduction <maximumf>, %156, %cst_46 [1] : vector<8x8xf32> to vector<8xf32>
    %158 = vector.shape_cast %157 : vector<8xf32> to vector<8x1xf32>
    %159 = vector.broadcast %158 : vector<8x1xf32> to vector<8x8xf32>
    %160 = arith.subf %156, %159 : vector<8x8xf32>
    %161 = math.exp %160 : vector<8x8xf32>
    %cst_47 = arith.constant dense<0.000000e+00> : vector<8xf32>
    %162 = vector.multi_reduction <add>, %161, %cst_47 [1] : vector<8x8xf32> to vector<8xf32>
    %163 = vector.shape_cast %162 : vector<8xf32> to vector<8x1xf32>
    %164 = tpu.reciprocal %163 : vector<8x1xf32> -> vector<8x1xf32>
    %165 = vector.broadcast %164 : vector<8x1xf32> to vector<8x8xf32>
    %166 = arith.mulf %161, %165 : vector<8x8xf32>
    %167 = arith.truncf %166 : vector<8x8xf32> to vector<8x8xbf16>
    %cst_48 = arith.constant dense<0.000000e+00> : vector<8x8xf32>
    %168 = tpu.matmul %167, %155, %cst_48 {dimension_numbers = #tpu.dot_dimension_numbers<[1], [0], [0], [1], [0, 0, 1, 1], [], []>} : vector<8x8xbf16>, vector<8x8xbf16>, vector<8x8xf32> -> vector<8x8xf32>
    %169 = arith.truncf %168 : vector<8x8xf32> to vector<8x8xbf16>
    %170 = vector.extract_strided_slice %12 {offsets = [8, 0], sizes = [8, 32], strides = [1, 1]} : vector<32x32xbf16> to vector<8x32xbf16>
    %cst_49 = arith.constant dense<0.000000e+00> : vector<8x32xf32>
    %171 = tpu.matmul %169, %170, %cst_49 {dimension_numbers = #tpu.dot_dimension_numbers<[1], [0], [0], [1], [0, 0, 1, 1], [], []>} : vector<8x8xbf16>, vector<8x32xbf16>, vector<8x32xf32> -> vector<8x32xf32>
    %172 = arith.addf %147, %171 : vector<8x32xf32>
    %173 = vector.extract_strided_slice %120 {offsets = [0, 64], sizes = [8, 16], strides = [1, 1]} : vector<8x128xf32> to vector<8x16xf32>
    %174 = arith.truncf %173 : vector<8x16xf32> to vector<8x16xbf16>
    %175 = vector.extract_strided_slice %120 {offsets = [0, 80], sizes = [8, 8], strides = [1, 1]} : vector<8x128xf32> to vector<8x8xf32>
    %176 = vector.extract_strided_slice %121 {offsets = [0, 16], sizes = [8, 8], strides = [1, 1]} : vector<8x32xf32> to vector<8x8xf32>
    %177 = tpu.concatenate %175, %176 in 1 : vector<8x8xf32>, vector<8x8xf32> -> vector<8x16xf32>
    %178 = arith.truncf %177 : vector<8x16xf32> to vector<8x16xbf16>
    %179 = vector.extract_strided_slice %120 {offsets = [0, 88], sizes = [8, 8], strides = [1, 1]} : vector<8x128xf32> to vector<8x8xf32>
    %180 = arith.truncf %179 : vector<8x8xf32> to vector<8x8xbf16>
    %cst_50 = arith.constant dense<0.000000e+00> : vector<8x8xf32>
    %181 = tpu.matmul %174, %178, %cst_50 {dimension_numbers = #tpu.dot_dimension_numbers<[1], [1], [0], [0], [0, 0, 1, 0], [], []>} : vector<8x16xbf16>, vector<8x16xbf16>, vector<8x8xf32> -> vector<8x8xf32>
    %cst_51 = arith.constant dense<0xFF800000> : vector<8xf32>
    %182 = vector.multi_reduction <maximumf>, %181, %cst_51 [1] : vector<8x8xf32> to vector<8xf32>
    %183 = vector.shape_cast %182 : vector<8xf32> to vector<8x1xf32>
    %184 = vector.broadcast %183 : vector<8x1xf32> to vector<8x8xf32>
    %185 = arith.subf %181, %184 : vector<8x8xf32>
    %186 = math.exp %185 : vector<8x8xf32>
    %cst_52 = arith.constant dense<0.000000e+00> : vector<8xf32>
    %187 = vector.multi_reduction <add>, %186, %cst_52 [1] : vector<8x8xf32> to vector<8xf32>
    %188 = vector.shape_cast %187 : vector<8xf32> to vector<8x1xf32>
    %189 = tpu.reciprocal %188 : vector<8x1xf32> -> vector<8x1xf32>
    %190 = vector.broadcast %189 : vector<8x1xf32> to vector<8x8xf32>
    %191 = arith.mulf %186, %190 : vector<8x8xf32>
    %192 = arith.truncf %191 : vector<8x8xf32> to vector<8x8xbf16>
    %cst_53 = arith.constant dense<0.000000e+00> : vector<8x8xf32>
    %193 = tpu.matmul %192, %180, %cst_53 {dimension_numbers = #tpu.dot_dimension_numbers<[1], [0], [0], [1], [0, 0, 1, 1], [], []>} : vector<8x8xbf16>, vector<8x8xbf16>, vector<8x8xf32> -> vector<8x8xf32>
    %194 = arith.truncf %193 : vector<8x8xf32> to vector<8x8xbf16>
    %195 = vector.extract_strided_slice %12 {offsets = [16, 0], sizes = [8, 32], strides = [1, 1]} : vector<32x32xbf16> to vector<8x32xbf16>
    %cst_54 = arith.constant dense<0.000000e+00> : vector<8x32xf32>
    %196 = tpu.matmul %194, %195, %cst_54 {dimension_numbers = #tpu.dot_dimension_numbers<[1], [0], [0], [1], [0, 0, 1, 1], [], []>} : vector<8x8xbf16>, vector<8x32xbf16>, vector<8x32xf32> -> vector<8x32xf32>
    %197 = arith.addf %172, %196 : vector<8x32xf32>
    %198 = vector.extract_strided_slice %120 {offsets = [0, 96], sizes = [8, 16], strides = [1, 1]} : vector<8x128xf32> to vector<8x16xf32>
    %199 = arith.truncf %198 : vector<8x16xf32> to vector<8x16xbf16>
    %200 = vector.extract_strided_slice %120 {offsets = [0, 112], sizes = [8, 8], strides = [1, 1]} : vector<8x128xf32> to vector<8x8xf32>
    %201 = vector.extract_strided_slice %121 {offsets = [0, 24], sizes = [8, 8], strides = [1, 1]} : vector<8x32xf32> to vector<8x8xf32>
    %202 = tpu.concatenate %200, %201 in 1 : vector<8x8xf32>, vector<8x8xf32> -> vector<8x16xf32>
    %203 = arith.truncf %202 : vector<8x16xf32> to vector<8x16xbf16>
    %204 = vector.extract_strided_slice %120 {offsets = [0, 120], sizes = [8, 8], strides = [1, 1]} : vector<8x128xf32> to vector<8x8xf32>
    %205 = arith.truncf %204 : vector<8x8xf32> to vector<8x8xbf16>
    %cst_55 = arith.constant dense<0.000000e+00> : vector<8x8xf32>
    %206 = tpu.matmul %199, %203, %cst_55 {dimension_numbers = #tpu.dot_dimension_numbers<[1], [1], [0], [0], [0, 0, 1, 0], [], []>} : vector<8x16xbf16>, vector<8x16xbf16>, vector<8x8xf32> -> vector<8x8xf32>
    %cst_56 = arith.constant dense<0xFF800000> : vector<8xf32>
    %207 = vector.multi_reduction <maximumf>, %206, %cst_56 [1] : vector<8x8xf32> to vector<8xf32>
    %208 = vector.shape_cast %207 : vector<8xf32> to vector<8x1xf32>
    %209 = vector.broadcast %208 : vector<8x1xf32> to vector<8x8xf32>
    %210 = arith.subf %206, %209 : vector<8x8xf32>
    %211 = math.exp %210 : vector<8x8xf32>
    %cst_57 = arith.constant dense<0.000000e+00> : vector<8xf32>
    %212 = vector.multi_reduction <add>, %211, %cst_57 [1] : vector<8x8xf32> to vector<8xf32>
    %213 = vector.shape_cast %212 : vector<8xf32> to vector<8x1xf32>
    %214 = tpu.reciprocal %213 : vector<8x1xf32> -> vector<8x1xf32>
    %215 = vector.broadcast %214 : vector<8x1xf32> to vector<8x8xf32>
    %216 = arith.mulf %211, %215 : vector<8x8xf32>
    %217 = arith.truncf %216 : vector<8x8xf32> to vector<8x8xbf16>
    %cst_58 = arith.constant dense<0.000000e+00> : vector<8x8xf32>
    %218 = tpu.matmul %217, %205, %cst_58 {dimension_numbers = #tpu.dot_dimension_numbers<[1], [0], [0], [1], [0, 0, 1, 1], [], []>} : vector<8x8xbf16>, vector<8x8xbf16>, vector<8x8xf32> -> vector<8x8xf32>
    %219 = arith.truncf %218 : vector<8x8xf32> to vector<8x8xbf16>
    %220 = vector.extract_strided_slice %12 {offsets = [24, 0], sizes = [8, 32], strides = [1, 1]} : vector<32x32xbf16> to vector<8x32xbf16>
    %cst_59 = arith.constant dense<0.000000e+00> : vector<8x32xf32>
    %221 = tpu.matmul %219, %220, %cst_59 {dimension_numbers = #tpu.dot_dimension_numbers<[1], [0], [0], [1], [0, 0, 1, 1], [], []>} : vector<8x8xbf16>, vector<8x32xbf16>, vector<8x32xf32> -> vector<8x32xf32>
    %222 = arith.addf %197, %221 : vector<8x32xf32>
    %223 = vector.broadcast %13 : vector<1x32xf32> to vector<8x32xf32>
    %224 = arith.addf %222, %223 : vector<8x32xf32>
    %c8 = arith.constant 8 : index
    %c0_60 = arith.constant 0 : index
    %225 = vector.load %arg9[%c8, %c0_60] : memref<16x32xf32, #tpu.memory_space<vmem>>, vector<8x32xf32>
    tpu.vector_store %arg9[%c8, %c0_60], %224 {strides = array<i32>} : memref<16x32xf32, #tpu.memory_space<vmem>>, vector<8x32xf32>,
    return
  }
  func.func @transform_0(%arg0: i32) -> (i32, i32) {
    %c0_i32 = arith.constant 0 : i32
    %c0_i32_0 = arith.constant 0 : i32
    %c0_i32_1 = arith.constant 0 : i32
    return %c0_i32, %c0_i32_0 : i32, i32
  }
  func.func @transform_1(%arg0: i32) -> (i32, i32) {
    %c0_i32 = arith.constant 0 : i32
    %c0_i32_0 = arith.constant 0 : i32
    %c0_i32_1 = arith.constant 0 : i32
    return %c0_i32, %c0_i32_0 : i32, i32
  }
  func.func @transform_2(%arg0: i32) -> (i32, i32) {
    %c0_i32 = arith.constant 0 : i32
    %c0_i32_0 = arith.constant 0 : i32
    %c0_i32_1 = arith.constant 0 : i32
    return %c0_i32, %c0_i32_0 : i32, i32
  }
  func.func @transform_3(%arg0: i32) -> (i32, i32) {
    %c0_i32 = arith.constant 0 : i32
    %c0_i32_0 = arith.constant 0 : i32
    %c0_i32_1 = arith.constant 0 : i32
    return %c0_i32, %c0_i32_0 : i32, i32
  }
  func.func @transform_4(%arg0: i32) -> (i32, i32) {
    %c0_i32 = arith.constant 0 : i32
    %c0_i32_0 = arith.constant 0 : i32
    %c0_i32_1 = arith.constant 0 : i32
    return %c0_i32, %c0_i32_0 : i32, i32
  }
  func.func @transform_5(%arg0: i32) -> (i32, i32) {
    %c0_i32 = arith.constant 0 : i32
    %c0_i32_0 = arith.constant 0 : i32
    %c0_i32_1 = arith.constant 0 : i32
    return %c0_i32, %c0_i32_0 : i32, i32
  }
  func.func @transform_6(%arg0: i32) -> (i32, i32) {
    %c0_i32 = arith.constant 0 : i32
    %c0_i32_0 = arith.constant 0 : i32
    %c0_i32_1 = arith.constant 0 : i32
    return %c0_i32, %c0_i32_0 : i32, i32
  }
  func.func @transform_7(%arg0: i32) -> (i32, i32) {
    %c0_i32 = arith.constant 0 : i32
    %c0_i32_0 = arith.constant 0 : i32
    %c0_i32_1 = arith.constant 0 : i32
    return %c0_i32, %c0_i32_0 : i32, i32
  }
  func.func @transform_8(%arg0: i32) -> (i32, i32) {
    %c0_i32 = arith.constant 0 : i32
    %c0_i32_0 = arith.constant 0 : i32
    %c0_i32_1 = arith.constant 0 : i32
    return %c0_i32, %c0_i32_0 : i32, i32
  }
}

</mosaic_0001>

<llo_original>
// kernel: sentence_word_attention.1
$region0: #{sentence_word_attention.1}
  #allocation0 [shape = 'u32[]', space=smem, size = 0x4, offset = 0x4, fixed_abs, tag = 'smem constant byte address 0x4 - core index']
  #allocation1 [shape = 'u32[72,128]{1,0:T(1,128)}', space=vmem, size = 0x9000, scoped, tag = 'internal scratch']
  %s0 = inlined_call_operand.vmem [shape: bf16[16,32], index: 0, kind: input, shape index: {}]
  %s1 = inlined_call_operand.vmem [shape: bf16[16,32], index: 1, kind: input, shape index: {}]
  %s2 = inlined_call_operand.vmem [shape: bf16[32,128], index: 2, kind: input, shape index: {}]
  %s3 = inlined_call_operand.vmem [shape: f32[1,128], index: 3, kind: input, shape index: {}]
  %s4 = inlined_call_operand.vmem [shape: bf16[32,32], index: 4, kind: input, shape index: {}]
  %s5 = inlined_call_operand.vmem [shape: f32[1,32], index: 5, kind: input, shape index: {}]
  %s6 = inlined_call_operand.vmem [shape: bf16[32,32], index: 6, kind: input, shape index: {}]
  %s7 = inlined_call_operand.vmem [shape: f32[1,32], index: 7, kind: input, shape index: {}]
  %s8 = inlined_call_operand.hbm [shape: f32[16,32], index: 8, kind: output, shape index: {}]
  %s9 = sld [smem:[#allocation0]]
  $region42: #{sentence_word_attention.1} parent=0
    _
  %s11 = ssub.s32 1, %s9
  %s12 = scalar_select 0, %s11, %s9
  $region1: #{sentence_word_attention.1} parent=0
    #allocation2 [shape = 'u8[8192]{0}', space=vmem, size = 0x2000, scoped, tag = 'output window, operand 0, single buffered']
    #allocation3 [shape = 's32[1]{0}', space=sflag, size = 0x4, scoped, tag = 'scoped memory for sentence_word_attention.1']
    %13 = vsyncpa [#allocation3], 0
    // Predicated region
    $region2: #{sentence_word_attention.1} parent=1 // pred_check
      _
    $region3: #{sentence_word_attention.1} parent=1 // pred_check_branch
      %15 = sbr.rel (0) target = $region5
    $region4: #{sentence_word_attention.1} parent=1 // pred_region
      _
    $region5: #{sentence_word_attention.1} parent=1 // pred_fallthru
      _
    // Predicated region
    $region6: #{sentence_word_attention.1} parent=1 // pred_check
      _
    $region7: #{sentence_word_attention.1} parent=1 // pred_check_branch
      %17 = sbr.rel (0) target = $region9
    $region8: #{sentence_word_attention.1} parent=1 // pred_region
      _
    $region9: #{sentence_word_attention.1} parent=1 // pred_fallthru
      _
    // Predicated region
    $region10: #{sentence_word_attention.1} parent=1 // pred_check
      _
    $region11: #{sentence_word_attention.1} parent=1 // pred_check_branch
      %19 = sbr.rel (0) target = $region13
    $region12: #{sentence_word_attention.1} parent=1 // pred_region
      _
    $region13: #{sentence_word_attention.1} parent=1 // pred_fallthru
      _
    // Predicated region
    $region14: #{sentence_word_attention.1} parent=1 // pred_check
      _
    $region15: #{sentence_word_attention.1} parent=1 // pred_check_branch
      %21 = sbr.rel (0) target = $region17
    $region16: #{sentence_word_attention.1} parent=1 // pred_region
      _
    $region17: #{sentence_word_attention.1} parent=1 // pred_fallthru
      _
    // Predicated region
    $region18: #{sentence_word_attention.1} parent=1 // pred_check
      _
    $region19: #{sentence_word_attention.1} parent=1 // pred_check_branch
      %23 = sbr.rel (0) target = $region21
    $region20: #{sentence_word_attention.1} parent=1 // pred_region
      _
    $region21: #{sentence_word_attention.1} parent=1 // pred_fallthru
      _
    // Predicated region
    $region22: #{sentence_word_attention.1} parent=1 // pred_check
      _
    $region23: #{sentence_word_attention.1} parent=1 // pred_check_branch
      %25 = sbr.rel (0) target = $region25
    $region24: #{sentence_word_attention.1} parent=1 // pred_region
      _
    $region25: #{sentence_word_attention.1} parent=1 // pred_fallthru
      _
    // Predicated region
    $region26: #{sentence_word_attention.1} parent=1 // pred_check
      _
    $region27: #{sentence_word_attention.1} parent=1 // pred_check_branch
      %27 = sbr.rel (0) target = $region29
    $region28: #{sentence_word_attention.1} parent=1 // pred_region
      _
    $region29: #{sentence_word_attention.1} parent=1 // pred_fallthru
      _
    // Predicated region
    $region30: #{sentence_word_attention.1} parent=1 // pred_check
      _
    $region31: #{sentence_word_attention.1} parent=1 // pred_check_branch
      %29 = sbr.rel (0) target = $region33
    $region32: #{sentence_word_attention.1} parent=1 // pred_region
      _
    $region33: #{sentence_word_attention.1} parent=1 // pred_fallthru
      _
    %v31 = vld [vmem:[%s0] sm:$0xf]
    %v32 = vld [vmem:[%s0 + $0x4] sm:$0xf]
    %v33 = vld [vmem:[%s2] sm:$0xf]
    %v34 = vld [vmem:[%s2 + $0x4] sm:$0xf]
    %v35 = vld [vmem:[%s2 + $0x8] sm:$0xf]
    %v36 = vld [vmem:[%s2 + $0xc] sm:$0xf]
    %v37 = vld [vmem:[%s3] sm:$0x1]
    %v39 = vperm.slane %v37, 0
    %v43 = vunpack.c.l.b16 %v31
    %v44 = vunpack.c.l.b16 %v32
    %v45 = vpack.c.b16 %v44, %v43
    %v50 = vunpack.c.l.b16 %v33
    %v51 = vunpack.c.l.b16 %v34
    %v52 = vunpack.c.l.b16 %v35
    %v53 = vunpack.c.l.b16 %v36
    %v54 = vpack.c.b16 %v51, %v50
    %v55 = vpack.c.b16 %v53, %v52
    %vm58 = vcmask 261120
    %v60 = vsel %vm58, %v45, 0
    %62 = vmatpush.bf16.msra.mxu0 0
    %63 = vmatpush.bf16.msra.mxu0 0
    %64 = vmatpush.bf16.msra.mxu0 0
    %65 = vmatpush.bf16.msra.mxu0 0
    %66 = vmatpush.bf16.msra.mxu0 0
    %67 = vmatpush.bf16.msra.mxu0 0
    %68 = vmatpush.bf16.msra.mxu0 %v55
    %69 = vmatpush.bf16.msra.mxu0 %v54
    %70 = vmatmul.bf16.gmra.mxu0 %v60
    %v71 = vpop.f32.mrf.mxu0
    %v72 = vadd.f32 %v39, %v71
    %v73 = vpop.f32.mrf.mxu0
    %v74 = vadd.f32 %v39, %v73
    %75 = vdwg.mxu0
    %v76 = vld [vmem:[%s1] sm:$0xf]
    %v77 = vld [vmem:[%s1 + $0x4] sm:$0xf]
    %v78 = vld [vmem:[%s4] sm:$0xf]
    %v79 = vld [vmem:[%s4 + $0x4] sm:$0xf]
    %v80 = vld [vmem:[%s4 + $0x8] sm:$0xf]
    %v81 = vld [vmem:[%s4 + $0xc] sm:$0xf]
    %v82 = vld [vmem:[%s5] sm:$0x1]
    %v84 = vperm.slane %v82, 0
    %v88 = vunpack.c.l.b16 %v76
    %v89 = vunpack.c.l.b16 %v77
    %v90 = vpack.c.b16 %v89, %v88
    %v95 = vunpack.c.l.b16 %v78
    %v96 = vunpack.c.l.b16 %v79
    %v97 = vunpack.c.l.b16 %v80
    %v98 = vunpack.c.l.b16 %v81
    %v99 = vpack.c.b16 %v96, %v95
    %v100 = vpack.c.b16 %v98, %v97
    %v104 = vsel %vm58, %v90, 0
    %106 = vmatpush.bf16.msra.mxu0 0
    %107 = vmatpush.bf16.msra.mxu0 0
    %108 = vmatpush.bf16.msra.mxu0 0
    %109 = vmatpush.bf16.msra.mxu0 0
    %110 = vmatpush.bf16.msra.mxu0 0
    %111 = vmatpush.bf16.msra.mxu0 0
    %112 = vmatpush.bf16.msra.mxu0 %v100
    %113 = vmatpush.bf16.msra.mxu0 %v99
    %114 = vmatmul.bf16.gmra.mxu0 %v104
    %v115 = vpop.f32.mrf.mxu0
    %v116 = vadd.f32 %v84, %v115
    %v117 = vpop.f32.mrf.mxu0
    %v118 = vadd.f32 %v84, %v117
    %119 = vdwg.mxu0
    %v120 = vld [vmem:[%s6] sm:$0xf]
    %v121 = vld [vmem:[%s6 + $0x4] sm:$0xf]
    %v122 = vld [vmem:[%s6 + $0x8] sm:$0xf]
    %v123 = vld [vmem:[%s6 + $0xc] sm:$0xf]
    %v124 = vld [vmem:[%s7] sm:$0x1]
    %v125 = vpack.c.bf16 %v72, %v72
    %127 = vrot.lane.b32.xlu0 %v72, 112
    %v128 = vpop.permute.xlu0 %127
    %131 = vrot.lane.b32.xlu0 %v116, 8
    %v132 = vpop.permute.xlu0 %131
    %vm134 = vcmask 64512
    %v135 = vsel %vm134, %v128, %v132
    %v136 = vpack.c.bf16 %v135, %v135
    %vm137 = vcmask 130048
    %v139 = vsel %vm137, %v125, 0
    %v142 = vsel %vm137, %v136, 0
    %144 = vmatpush.bf16.xpose.msra.mxu0 0
    %145 = vmatpush.bf16.xpose.msra.mxu0 0
    %146 = vmatpush.bf16.xpose.msra.mxu0 0
    %147 = vmatpush.bf16.xpose.msra.mxu0 0
    %148 = vmatpush.bf16.xpose.msra.mxu0 0
    %149 = vmatpush.bf16.xpose.msra.mxu0 0
    %150 = vmatpush.bf16.xpose.msra.mxu0 0
    %151 = vmatpush.bf16.xpose.msra.mxu0 %v142
    %152 = vmatmul.bf16.gmra.mxu0 %v139
    %v153 = vpop.f32.mrf.mxu0
    %v154 = vadd.f32 0.0, %v153
    %v155 = vpop.f32.mrf.mxu0
    %156 = vdwg.mxu0
    %v157 = vsel %vm134, %v154, -inf
    %158 = vmax.xlane.f32.xlu0 %v157
    %v159 = vpop.xlane.xlu0 %158
    %v160 = vsub.f32 %v154, %v159
    %v161 = vmul.f32 %v160, 1.442695
    %v162 = vpow.pop %v161
    %v163 = vsel %vm134, %v162, 0.0
    %164 = vadd.xlane.f32.xlu0 %v163
    %v165 = vpop.xlane.xlu0 %164
    %v166 = vrcp.pop %v165
    %v167 = vmul.f32 %v165, %v166
    %v168 = vsub.f32 1.0, %v167
    %v169 = vmul.f32 %v166, %v168
    %v170 = vadd.f32 %v166, %v169
    %vm171 = vweird.f32 %v165
    %vm172 = vweird.f32 %v166
    %vm173 = vmor %vm171, %vm172
    %v174 = vsel %vm173, %v166, %v170
    %v175 = vand.u32 2147483647, %v165
    %vm176 = vcmp.eq.f32.partialorder %v175, 8.507059e+37
    %v177 = vand.u32 %v165, 2147483648
    %v178 = vor.u32 1.1754944e-38, %v177
    %v179 = vsel %vm176, %v178, %v174
    %v180 = vmul.f32 %v162, %v179
    %v181 = vpack.c.bf16 %v180, %v180
    %183 = vrot.lane.b32.xlu0 %v125, 104
    %v184 = vpop.permute.xlu0 %183
    %v186 = vsel %vm134, %v181, 0
    %vm188 = vcmask 1043456
    %v190 = vsel %vm188, %v184, 0
    %192 = vmatpush.bf16.msra.mxu0 0
    %193 = vmatpush.bf16.msra.mxu0 0
    %194 = vmatpush.bf16.msra.mxu0 0
    %195 = vmatpush.bf16.msra.mxu0 0
    %196 = vmatpush.bf16.msra.mxu0 0
    %197 = vmatpush.bf16.msra.mxu0 0
    %198 = vmatpush.bf16.msra.mxu0 0
    %199 = vmatpush.bf16.msra.mxu0 %v190
    %200 = vmatmul.bf16.gmra.mxu0 %v186
    %v201 = vpop.f32.mrf.mxu0
    %v202 = vadd.f32 0.0, %v201
    %v203 = vpop.f32.mrf.mxu0
    %204 = vdwg.mxu0
    %v205 = vpack.c.bf16 %v202, %v202
    %206 = vrot.lane.b32.xlu0 %v72, 80
    %v207 = vpop.permute.xlu0 %206
    %v209 = vsel %vm134, %v207, %v116
    %v210 = vpack.c.bf16 %v209, %v209
    %211 = vrot.lane.b32.xlu0 %v125, 96
    %v212 = vpop.permute.xlu0 %211
    %v214 = vsel %vm137, %v212, 0
    %v217 = vsel %vm137, %v210, 0
    %219 = vmatpush.bf16.xpose.msra.mxu0 0
    %220 = vmatpush.bf16.xpose.msra.mxu0 0
    %221 = vmatpush.bf16.xpose.msra.mxu0 0
    %222 = vmatpush.bf16.xpose.msra.mxu0 0
    %223 = vmatpush.bf16.xpose.msra.mxu0 0
    %224 = vmatpush.bf16.xpose.msra.mxu0 0
    %225 = vmatpush.bf16.xpose.msra.mxu0 0
    %226 = vmatpush.bf16.xpose.msra.mxu0 %v217
    %227 = vmatmul.bf16.gmra.mxu0 %v214
    %v228 = vpop.f32.mrf.mxu0
    %v229 = vadd.f32 0.0, %v228
    %v230 = vpop.f32.mrf.mxu0
    %231 = vdwg.mxu0
    %v232 = vsel %vm134, %v229, -inf
    %233 = vmax.xlane.f32.xlu0 %v232
    %v234 = vpop.xlane.xlu0 %233
    %v235 = vsub.f32 %v229, %v234
    %v236 = vmul.f32 %v235, 1.442695
    %v237 = vpow.pop %v236
    %v238 = vsel %vm134, %v237, 0.0
    %239 = vadd.xlane.f32.xlu0 %v238
    %v240 = vpop.xlane.xlu0 %239
    %v241 = vrcp.pop %v240
    %v242 = vmul.f32 %v240, %v241
    %v243 = vsub.f32 1.0, %v242
    %v244 = vmul.f32 %v241, %v243
    %v245 = vadd.f32 %v241, %v244
    %vm246 = vweird.f32 %v240
    %vm247 = vweird.f32 %v241
    %vm248 = vmor %vm246, %vm247
    %v249 = vsel %vm248, %v241, %v245
    %v250 = vand.u32 2147483647, %v240
    %vm251 = vcmp.eq.f32.partialorder %v250, 8.507059e+37
    %v252 = vand.u32 %v240, 2147483648
    %v253 = vor.u32 1.1754944e-38, %v252
    %v254 = vsel %vm251, %v253, %v249
    %v255 = vmul.f32 %v237, %v254
    %v256 = vpack.c.bf16 %v255, %v255
    %257 = vrot.lane.b32.xlu0 %v125, 72
    %v258 = vpop.permute.xlu0 %257
    %v260 = vsel %vm134, %v256, 0
    %v263 = vsel %vm188, %v258, 0
    %265 = vmatpush.bf16.msra.mxu0 0
    %266 = vmatpush.bf16.msra.mxu0 0
    %267 = vmatpush.bf16.msra.mxu0 0
    %268 = vmatpush.bf16.msra.mxu0 0
    %269 = vmatpush.bf16.msra.mxu0 0
    %270 = vmatpush.bf16.msra.mxu0 0
    %271 = vmatpush.bf16.msra.mxu0 0
    %272 = vmatpush.bf16.msra.mxu0 %v263
    %273 = vmatmul.bf16.gmra.mxu0 %v260
    %v274 = vpop.f32.mrf.mxu0
    %v275 = vadd.f32 0.0, %v274
    %v276 = vpop.f32.mrf.mxu0
    %277 = vdwg.mxu0
    %v278 = vpack.c.bf16 %v275, %v275
    %v280 = vsel %vm134, %v278, 0
    %v283 = vsel %vm188, %v121, 0
    %285 = vmatpush.bf16.msra.mxu0 0
    %286 = vmatpush.bf16.msra.mxu0 0
    %287 = vmatpush.bf16.msra.mxu0 0
    %288 = vmatpush.bf16.msra.mxu0 0
    %289 = vmatpush.bf16.msra.mxu0 0
    %290 = vmatpush.bf16.msra.mxu0 0
    %291 = vmatpush.bf16.msra.mxu0 0
    %292 = vmatpush.bf16.msra.mxu0 %v283
    %293 = vmatmul.bf16.gmra.mxu0 %v280
    %v294 = vpop.f32.mrf.mxu0
    %v295 = vadd.f32 0.0, %v294
    %v296 = vpop.f32.mrf.mxu0
    %297 = vdwg.mxu0
    %v299 = vsel %vm134, %v205, 0
    %v302 = vsel %vm188, %v120, 0
    %304 = vmatpush.bf16.msra.mxu0 0
    %305 = vmatpush.bf16.msra.mxu0 0
    %306 = vmatpush.bf16.msra.mxu0 0
    %307 = vmatpush.bf16.msra.mxu0 0
    %308 = vmatpush.bf16.msra.mxu0 0
    %309 = vmatpush.bf16.msra.mxu0 0
    %310 = vmatpush.bf16.msra.mxu0 0
    %311 = vmatpush.bf16.msra.mxu0 %v302
    %312 = vmatmul.bf16.gmra.mxu0 %v299
    %v313 = vpop.f32.mrf.mxu0
    %v314 = vadd.f32 %v295, %v313
    %v315 = vpop.f32.mrf.mxu0
    %316 = vdwg.mxu0
    %317 = vrot.lane.b32.xlu0 %v72, 48
    %v318 = vpop.permute.xlu0 %317
    %320 = vrot.lane.b32.xlu0 %v116, 120
    %v321 = vpop.permute.xlu0 %320
    %v323 = vsel %vm134, %v318, %v321
    %v324 = vpack.c.bf16 %v323, %v323
    %325 = vrot.lane.b32.xlu0 %v125, 64
    %v326 = vpop.permute.xlu0 %325
    %v328 = vsel %vm137, %v326, 0
    %v331 = vsel %vm137, %v324, 0
    %333 = vmatpush.bf16.xpose.msra.mxu0 0
    %334 = vmatpush.bf16.xpose.msra.mxu0 0
    %335 = vmatpush.bf16.xpose.msra.mxu0 0
    %336 = vmatpush.bf16.xpose.msra.mxu0 0
    %337 = vmatpush.bf16.xpose.msra.mxu0 0
    %338 = vmatpush.bf16.xpose.msra.mxu0 0
    %339 = vmatpush.bf16.xpose.msra.mxu0 0
    %340 = vmatpush.bf16.xpose.msra.mxu0 %v331
    %341 = vmatmul.bf16.gmra.mxu0 %v328
    %v342 = vpop.f32.mrf.mxu0
    %v343 = vadd.f32 0.0, %v342
    %v344 = vpop.f32.mrf.mxu0
    %345 = vdwg.mxu0
    %v346 = vsel %vm134, %v343, -inf
    %347 = vmax.xlane.f32.xlu0 %v346
    %v348 = vpop.xlane.xlu0 %347
    %v349 = vsub.f32 %v343, %v348
    %v350 = vmul.f32 %v349, 1.442695
    %v351 = vpow.pop %v350
    %v352 = vsel %vm134, %v351, 0.0
    %353 = vadd.xlane.f32.xlu0 %v352
    %v354 = vpop.xlane.xlu0 %353
    %v355 = vrcp.pop %v354
    %v356 = vmul.f32 %v354, %v355
    %v357 = vsub.f32 1.0, %v356
    %v358 = vmul.f32 %v355, %v357
    %v359 = vadd.f32 %v355, %v358
    %vm360 = vweird.f32 %v354
    %vm361 = vweird.f32 %v355
    %vm362 = vmor %vm360, %vm361
    %v363 = vsel %vm362, %v355, %v359
    %v364 = vand.u32 2147483647, %v354
    %vm365 = vcmp.eq.f32.partialorder %v364, 8.507059e+37
    %v366 = vand.u32 %v354, 2147483648
    %v367 = vor.u32 1.1754944e-38, %v366
    %v368 = vsel %vm365, %v367, %v363
    %v369 = vmul.f32 %v351, %v368
    %v370 = vpack.c.bf16 %v369, %v369
    %371 = vrot.lane.b32.xlu0 %v125, 40
    %v372 = vpop.permute.xlu0 %371
    %v374 = vsel %vm134, %v370, 0
    %v377 = vsel %vm188, %v372, 0
    %379 = vmatpush.bf16.msra.mxu0 0
    %380 = vmatpush.bf16.msra.mxu0 0
    %381 = vmatpush.bf16.msra.mxu0 0
    %382 = vmatpush.bf16.msra.mxu0 0
    %383 = vmatpush.bf16.msra.mxu0 0
    %384 = vmatpush.bf16.msra.mxu0 0
    %385 = vmatpush.bf16.msra.mxu0 0
    %386 = vmatpush.bf16.msra.mxu0 %v377
    %387 = vmatmul.bf16.gmra.mxu0 %v374
    %v388 = vpop.f32.mrf.mxu0
    %v389 = vadd.f32 0.0, %v388
    %v390 = vpop.f32.mrf.mxu0
    %391 = vdwg.mxu0
    %v392 = vpack.c.bf16 %v389, %v389
    %v394 = vsel %vm134, %v392, 0
    %v397 = vsel %vm188, %v122, 0
    %399 = vmatpush.bf16.msra.mxu0 0
    %400 = vmatpush.bf16.msra.mxu0 0
    %401 = vmatpush.bf16.msra.mxu0 0
    %402 = vmatpush.bf16.msra.mxu0 0
    %403 = vmatpush.bf16.msra.mxu0 0
    %404 = vmatpush.bf16.msra.mxu0 0
    %405 = vmatpush.bf16.msra.mxu0 0
    %406 = vmatpush.bf16.msra.mxu0 %v397
    %407 = vmatmul.bf16.gmra.mxu0 %v394
    %v408 = vpop.f32.mrf.mxu0
    %v409 = vadd.f32 0.0, %v408
    %v410 = vpop.f32.mrf.mxu0
    %411 = vdwg.mxu0
    %v412 = vadd.f32 %v314, %v409
    %413 = vrot.lane.b32.xlu0 %v72, 16
    %v414 = vpop.permute.xlu0 %413
    %416 = vrot.lane.b32.xlu0 %v116, 112
    %v417 = vpop.permute.xlu0 %416
    %v419 = vsel %vm134, %v414, %v417
    %v420 = vpack.c.bf16 %v419, %v419
    %421 = vrot.lane.b32.xlu0 %v125, 32
    %v422 = vpop.permute.xlu0 %421
    %v424 = vsel %vm137, %v422, 0
    %v427 = vsel %vm137, %v420, 0
    %429 = vmatpush.bf16.xpose.msra.mxu0 0
    %430 = vmatpush.bf16.xpose.msra.mxu0 0
    %431 = vmatpush.bf16.xpose.msra.mxu0 0
    %432 = vmatpush.bf16.xpose.msra.mxu0 0
    %433 = vmatpush.bf16.xpose.msra.mxu0 0
    %434 = vmatpush.bf16.xpose.msra.mxu0 0
    %435 = vmatpush.bf16.xpose.msra.mxu0 0
    %436 = vmatpush.bf16.xpose.msra.mxu0 %v427
    %437 = vmatmul.bf16.gmra.mxu0 %v424
    %v438 = vpop.f32.mrf.mxu0
    %v439 = vadd.f32 0.0, %v438
    %v440 = vpop.f32.mrf.mxu0
    %441 = vdwg.mxu0
    %v442 = vsel %vm134, %v439, -inf
    %443 = vmax.xlane.f32.xlu0 %v442
    %v444 = vpop.xlane.xlu0 %443
    %v445 = vsub.f32 %v439, %v444
    %v446 = vmul.f32 %v445, 1.442695
    %v447 = vpow.pop %v446
    %v448 = vsel %vm134, %v447, 0.0
    %449 = vadd.xlane.f32.xlu0 %v448
    %v450 = vpop.xlane.xlu0 %449
    %v451 = vrcp.pop %v450
    %v452 = vmul.f32 %v450, %v451
    %v453 = vsub.f32 1.0, %v452
    %v454 = vmul.f32 %v451, %v453
    %v455 = vadd.f32 %v451, %v454
    %vm456 = vweird.f32 %v450
    %vm457 = vweird.f32 %v451
    %vm458 = vmor %vm456, %vm457
    %v459 = vsel %vm458, %v451, %v455
    %v460 = vand.u32 2147483647, %v450
    %vm461 = vcmp.eq.f32.partialorder %v460, 8.507059e+37
    %v462 = vand.u32 %v450, 2147483648
    %v463 = vor.u32 1.1754944e-38, %v462
    %v464 = vsel %vm461, %v463, %v459
    %v465 = vmul.f32 %v447, %v464
    %v466 = vpack.c.bf16 %v465, %v465
    %467 = vrot.lane.b32.xlu0 %v125, 8
    %v468 = vpop.permute.xlu0 %467
    %v470 = vsel %vm134, %v466, 0
    %v473 = vsel %vm188, %v468, 0
    %475 = vmatpush.bf16.msra.mxu0 0
    %476 = vmatpush.bf16.msra.mxu0 0
    %477 = vmatpush.bf16.msra.mxu0 0
    %478 = vmatpush.bf16.msra.mxu0 0
    %479 = vmatpush.bf16.msra.mxu0 0
    %480 = vmatpush.bf16.msra.mxu0 0
    %481 = vmatpush.bf16.msra.mxu0 0
    %482 = vmatpush.bf16.msra.mxu0 %v473
    %483 = vmatmul.bf16.gmra.mxu0 %v470
    %v484 = vpop.f32.mrf.mxu0
    %v485 = vadd.f32 0.0, %v484
    %v486 = vpop.f32.mrf.mxu0
    %487 = vdwg.mxu0
    %v488 = vpack.c.bf16 %v485, %v485
    %v490 = vsel %vm134, %v488, 0
    %v493 = vsel %vm188, %v123, 0
    %495 = vmatpush.bf16.msra.mxu0 0
    %496 = vmatpush.bf16.msra.mxu0 0
    %497 = vmatpush.bf16.msra.mxu0 0
    %498 = vmatpush.bf16.msra.mxu0 0
    %499 = vmatpush.bf16.msra.mxu0 0
    %500 = vmatpush.bf16.msra.mxu0 0
    %501 = vmatpush.bf16.msra.mxu0 0
    %502 = vmatpush.bf16.msra.mxu0 %v493
    %503 = vmatmul.bf16.gmra.mxu0 %v490
    %v504 = vpop.f32.mrf.mxu0
    %v505 = vadd.f32 0.0, %v504
    %v506 = vpop.f32.mrf.mxu0
    %507 = vdwg.mxu0
    %v508 = vadd.f32 %v412, %v505
    %v510 = vperm.slane %v124, 0
    %v512 = vadd.f32 %v508, %v510
    %513 = vst.msk [vmem:[#allocation2] sm:$0xff] %vm58, %v512
    %v514 = vpack.c.bf16 %v74, %v74
    %516 = vrot.lane.b32.xlu0 %v74, 112
    %v517 = vpop.permute.xlu0 %516
    %520 = vrot.lane.b32.xlu0 %v118, 8
    %v521 = vpop.permute.xlu0 %520
    %v523 = vsel %vm134, %v517, %v521
    %v524 = vpack.c.bf16 %v523, %v523
    %v526 = vsel %vm137, %v514, 0
    %v529 = vsel %vm137, %v524, 0
    %531 = vmatpush.bf16.xpose.msra.mxu0 0
    %532 = vmatpush.bf16.xpose.msra.mxu0 0
    %533 = vmatpush.bf16.xpose.msra.mxu0 0
    %534 = vmatpush.bf16.xpose.msra.mxu0 0
    %535 = vmatpush.bf16.xpose.msra.mxu0 0
    %536 = vmatpush.bf16.xpose.msra.mxu0 0
    %537 = vmatpush.bf16.xpose.msra.mxu0 0
    %538 = vmatpush.bf16.xpose.msra.mxu0 %v529
    %539 = vmatmul.bf16.gmra.mxu0 %v526
    %v540 = vpop.f32.mrf.mxu0
    %v541 = vadd.f32 0.0, %v540
    %v542 = vpop.f32.mrf.mxu0
    %543 = vdwg.mxu0
    %v544 = vsel %vm134, %v541, -inf
    %545 = vmax.xlane.f32.xlu0 %v544
    %v546 = vpop.xlane.xlu0 %545
    %v547 = vsub.f32 %v541, %v546
    %v548 = vmul.f32 %v547, 1.442695
    %v549 = vpow.pop %v548
    %v550 = vsel %vm134, %v549, 0.0
    %551 = vadd.xlane.f32.xlu0 %v550
    %v552 = vpop.xlane.xlu0 %551
    %v553 = vrcp.pop %v552
    %v554 = vmul.f32 %v552, %v553
    %v555 = vsub.f32 1.0, %v554
    %v556 = vmul.f32 %v553, %v555
    %v557 = vadd.f32 %v553, %v556
    %vm558 = vweird.f32 %v552
    %vm559 = vweird.f32 %v553
    %vm560 = vmor %vm558, %vm559
    %v561 = vsel %vm560, %v553, %v557
    %v562 = vand.u32 2147483647, %v552
    %vm563 = vcmp.eq.f32.partialorder %v562, 8.507059e+37
    %v564 = vand.u32 %v552, 2147483648
    %v565 = vor.u32 1.1754944e-38, %v564
    %v566 = vsel %vm563, %v565, %v561
    %v567 = vmul.f32 %v549, %v566
    %v568 = vpack.c.bf16 %v567, %v567
    %570 = vrot.lane.b32.xlu0 %v514, 104
    %v571 = vpop.permute.xlu0 %570
    %v573 = vsel %vm134, %v568, 0
    %v576 = vsel %vm188, %v571, 0
    %578 = vmatpush.bf16.msra.mxu0 0
    %579 = vmatpush.bf16.msra.mxu0 0
    %580 = vmatpush.bf16.msra.mxu0 0
    %581 = vmatpush.bf16.msra.mxu0 0
    %582 = vmatpush.bf16.msra.mxu0 0
    %583 = vmatpush.bf16.msra.mxu0 0
    %584 = vmatpush.bf16.msra.mxu0 0
    %585 = vmatpush.bf16.msra.mxu0 %v576
    %586 = vmatmul.bf16.gmra.mxu0 %v573
    %v587 = vpop.f32.mrf.mxu0
    %v588 = vadd.f32 0.0, %v587
    %v589 = vpop.f32.mrf.mxu0
    %590 = vdwg.mxu0
    %v591 = vpack.c.bf16 %v588, %v588
    %592 = vrot.lane.b32.xlu0 %v74, 80
    %v593 = vpop.permute.xlu0 %592
    %v595 = vsel %vm134, %v593, %v118
    %v596 = vpack.c.bf16 %v595, %v595
    %597 = vrot.lane.b32.xlu0 %v514, 96
    %v598 = vpop.permute.xlu0 %597
    %v600 = vsel %vm137, %v598, 0
    %v603 = vsel %vm137, %v596, 0
    %605 = vmatpush.bf16.xpose.msra.mxu0 0
    %606 = vmatpush.bf16.xpose.msra.mxu0 0
    %607 = vmatpush.bf16.xpose.msra.mxu0 0
    %608 = vmatpush.bf16.xpose.msra.mxu0 0
    %609 = vmatpush.bf16.xpose.msra.mxu0 0
    %610 = vmatpush.bf16.xpose.msra.mxu0 0
    %611 = vmatpush.bf16.xpose.msra.mxu0 0
    %612 = vmatpush.bf16.xpose.msra.mxu0 %v603
    %613 = vmatmul.bf16.gmra.mxu0 %v600
    %v614 = vpop.f32.mrf.mxu0
    %v615 = vadd.f32 0.0, %v614
    %v616 = vpop.f32.mrf.mxu0
    %617 = vdwg.mxu0
    %v618 = vsel %vm134, %v615, -inf
    %619 = vmax.xlane.f32.xlu0 %v618
    %v620 = vpop.xlane.xlu0 %619
    %v621 = vsub.f32 %v615, %v620
    %v622 = vmul.f32 %v621, 1.442695
    %v623 = vpow.pop %v622
    %v624 = vsel %vm134, %v623, 0.0
    %625 = vadd.xlane.f32.xlu0 %v624
    %v626 = vpop.xlane.xlu0 %625
    %v627 = vrcp.pop %v626
    %v628 = vmul.f32 %v626, %v627
    %v629 = vsub.f32 1.0, %v628
    %v630 = vmul.f32 %v627, %v629
    %v631 = vadd.f32 %v627, %v630
    %vm632 = vweird.f32 %v626
    %vm633 = vweird.f32 %v627
    %vm634 = vmor %vm632, %vm633
    %v635 = vsel %vm634, %v627, %v631
    %v636 = vand.u32 2147483647, %v626
    %vm637 = vcmp.eq.f32.partialorder %v636, 8.507059e+37
    %v638 = vand.u32 %v626, 2147483648
    %v639 = vor.u32 1.1754944e-38, %v638
    %v640 = vsel %vm637, %v639, %v635
    %v641 = vmul.f32 %v623, %v640
    %v642 = vpack.c.bf16 %v641, %v641
    %643 = vrot.lane.b32.xlu0 %v514, 72
    %v644 = vpop.permute.xlu0 %643
    %v646 = vsel %vm134, %v642, 0
    %v649 = vsel %vm188, %v644, 0
    %651 = vmatpush.bf16.msra.mxu0 0
    %652 = vmatpush.bf16.msra.mxu0 0
    %653 = vmatpush.bf16.msra.mxu0 0
    %654 = vmatpush.bf16.msra.mxu0 0
    %655 = vmatpush.bf16.msra.mxu0 0
    %656 = vmatpush.bf16.msra.mxu0 0
    %657 = vmatpush.bf16.msra.mxu0 0
    %658 = vmatpush.bf16.msra.mxu0 %v649
    %659 = vmatmul.bf16.gmra.mxu0 %v646
    %v660 = vpop.f32.mrf.mxu0
    %v661 = vadd.f32 0.0, %v660
    %v662 = vpop.f32.mrf.mxu0
    %663 = vdwg.mxu0
    %v664 = vpack.c.bf16 %v661, %v661
    %v666 = vsel %vm134, %v664, 0
    %668 = vmatpush.bf16.msra.mxu0 0
    %669 = vmatpush.bf16.msra.mxu0 0
    %670 = vmatpush.bf16.msra.mxu0 0
    %671 = vmatpush.bf16.msra.mxu0 0
    %672 = vmatpush.bf16.msra.mxu0 0
    %673 = vmatpush.bf16.msra.mxu0 0
    %674 = vmatpush.bf16.msra.mxu0 0
    %675 = vmatpush.bf16.msra.mxu0 %v283
    %676 = vmatmul.bf16.gmra.mxu0 %v666
    %v677 = vpop.f32.mrf.mxu0
    %v678 = vadd.f32 0.0, %v677
    %v679 = vpop.f32.mrf.mxu0
    %680 = vdwg.mxu0
    %v682 = vsel %vm134, %v591, 0
    %684 = vmatpush.bf16.msra.mxu0 0
    %685 = vmatpush.bf16.msra.mxu0 0
    %686 = vmatpush.bf16.msra.mxu0 0
    %687 = vmatpush.bf16.msra.mxu0 0
    %688 = vmatpush.bf16.msra.mxu0 0
    %689 = vmatpush.bf16.msra.mxu0 0
    %690 = vmatpush.bf16.msra.mxu0 0
    %691 = vmatpush.bf16.msra.mxu0 %v302
    %692 = vmatmul.bf16.gmra.mxu0 %v682
    %v693 = vpop.f32.mrf.mxu0
    %v694 = vadd.f32 %v678, %v693
    %v695 = vpop.f32.mrf.mxu0
    %696 = vdwg.mxu0
    %697 = vrot.lane.b32.xlu0 %v74, 48
    %v698 = vpop.permute.xlu0 %697
    %700 = vrot.lane.b32.xlu0 %v118, 120
    %v701 = vpop.permute.xlu0 %700
    %v703 = vsel %vm134, %v698, %v701
    %v704 = vpack.c.bf16 %v703, %v703
    %705 = vrot.lane.b32.xlu0 %v514, 64
    %v706 = vpop.permute.xlu0 %705
    %v708 = vsel %vm137, %v706, 0
    %v711 = vsel %vm137, %v704, 0
    %713 = vmatpush.bf16.xpose.msra.mxu0 0
    %714 = vmatpush.bf16.xpose.msra.mxu0 0
    %715 = vmatpush.bf16.xpose.msra.mxu0 0
    %716 = vmatpush.bf16.xpose.msra.mxu0 0
    %717 = vmatpush.bf16.xpose.msra.mxu0 0
    %718 = vmatpush.bf16.xpose.msra.mxu0 0
    %719 = vmatpush.bf16.xpose.msra.mxu0 0
    %720 = vmatpush.bf16.xpose.msra.mxu0 %v711
    %721 = vmatmul.bf16.gmra.mxu0 %v708
    %v722 = vpop.f32.mrf.mxu0
    %v723 = vadd.f32 0.0, %v722
    %v724 = vpop.f32.mrf.mxu0
    %725 = vdwg.mxu0
    %v726 = vsel %vm134, %v723, -inf
    %727 = vmax.xlane.f32.xlu0 %v726
    %v728 = vpop.xlane.xlu0 %727
    %v729 = vsub.f32 %v723, %v728
    %v730 = vmul.f32 %v729, 1.442695
    %v731 = vpow.pop %v730
    %v732 = vsel %vm134, %v731, 0.0
    %733 = vadd.xlane.f32.xlu0 %v732
    %v734 = vpop.xlane.xlu0 %733
    %v735 = vrcp.pop %v734
    %v736 = vmul.f32 %v734, %v735
    %v737 = vsub.f32 1.0, %v736
    %v738 = vmul.f32 %v735, %v737
    %v739 = vadd.f32 %v735, %v738
    %vm740 = vweird.f32 %v734
    %vm741 = vweird.f32 %v735
    %vm742 = vmor %vm740, %vm741
    %v743 = vsel %vm742, %v735, %v739
    %v744 = vand.u32 2147483647, %v734
    %vm745 = vcmp.eq.f32.partialorder %v744, 8.507059e+37
    %v746 = vand.u32 %v734, 2147483648
    %v747 = vor.u32 1.1754944e-38, %v746
    %v748 = vsel %vm745, %v747, %v743
    %v749 = vmul.f32 %v731, %v748
    %v750 = vpack.c.bf16 %v749, %v749
    %751 = vrot.lane.b32.xlu0 %v514, 40
    %v752 = vpop.permute.xlu0 %751
    %v754 = vsel %vm134, %v750, 0
    %v757 = vsel %vm188, %v752, 0
    %759 = vmatpush.bf16.msra.mxu0 0
    %760 = vmatpush.bf16.msra.mxu0 0
    %761 = vmatpush.bf16.msra.mxu0 0
    %762 = vmatpush.bf16.msra.mxu0 0
    %763 = vmatpush.bf16.msra.mxu0 0
    %764 = vmatpush.bf16.msra.mxu0 0
    %765 = vmatpush.bf16.msra.mxu0 0
    %766 = vmatpush.bf16.msra.mxu0 %v757
    %767 = vmatmul.bf16.gmra.mxu0 %v754
    %v768 = vpop.f32.mrf.mxu0
    %v769 = vadd.f32 0.0, %v768
    %v770 = vpop.f32.mrf.mxu0
    %771 = vdwg.mxu0
    %v772 = vpack.c.bf16 %v769, %v769
    %v774 = vsel %vm134, %v772, 0
    %776 = vmatpush.bf16.msra.mxu0 0
    %777 = vmatpush.bf16.msra.mxu0 0
    %778 = vmatpush.bf16.msra.mxu0 0
    %779 = vmatpush.bf16.msra.mxu0 0
    %780 = vmatpush.bf16.msra.mxu0 0
    %781 = vmatpush.bf16.msra.mxu0 0
    %782 = vmatpush.bf16.msra.mxu0 0
    %783 = vmatpush.bf16.msra.mxu0 %v397
    %784 = vmatmul.bf16.gmra.mxu0 %v774
    %v785 = vpop.f32.mrf.mxu0
    %v786 = vadd.f32 0.0, %v785
    %v787 = vpop.f32.mrf.mxu0
    %788 = vdwg.mxu0
    %v789 = vadd.f32 %v694, %v786
    %790 = vrot.lane.b32.xlu0 %v74, 16
    %v791 = vpop.permute.xlu0 %790
    %793 = vrot.lane.b32.xlu0 %v118, 112
    %v794 = vpop.permute.xlu0 %793
    %v796 = vsel %vm134, %v791, %v794
    %v797 = vpack.c.bf16 %v796, %v796
    %798 = vrot.lane.b32.xlu0 %v514, 32
    %v799 = vpop.permute.xlu0 %798
    %v801 = vsel %vm137, %v799, 0
    %v804 = vsel %vm137, %v797, 0
    %806 = vmatpush.bf16.xpose.msra.mxu0 0
    %807 = vmatpush.bf16.xpose.msra.mxu0 0
    %808 = vmatpush.bf16.xpose.msra.mxu0 0
    %809 = vmatpush.bf16.xpose.msra.mxu0 0
    %810 = vmatpush.bf16.xpose.msra.mxu0 0
    %811 = vmatpush.bf16.xpose.msra.mxu0 0
    %812 = vmatpush.bf16.xpose.msra.mxu0 0
    %813 = vmatpush.bf16.xpose.msra.mxu0 %v804
    %814 = vmatmul.bf16.gmra.mxu0 %v801
    %v815 = vpop.f32.mrf.mxu0
    %v816 = vadd.f32 0.0, %v815
    %v817 = vpop.f32.mrf.mxu0
    %818 = vdwg.mxu0
    %v819 = vsel %vm134, %v816, -inf
    %820 = vmax.xlane.f32.xlu0 %v819
    %v821 = vpop.xlane.xlu0 %820
    %v822 = vsub.f32 %v816, %v821
    %v823 = vmul.f32 %v822, 1.442695
    %v824 = vpow.pop %v823
    %v825 = vsel %vm134, %v824, 0.0
    %826 = vadd.xlane.f32.xlu0 %v825
    %v827 = vpop.xlane.xlu0 %826
    %v828 = vrcp.pop %v827
    %v829 = vmul.f32 %v827, %v828
    %v830 = vsub.f32 1.0, %v829
    %v831 = vmul.f32 %v828, %v830
    %v832 = vadd.f32 %v828, %v831
    %vm833 = vweird.f32 %v827
    %vm834 = vweird.f32 %v828
    %vm835 = vmor %vm833, %vm834
    %v836 = vsel %vm835, %v828, %v832
    %v837 = vand.u32 2147483647, %v827
    %vm838 = vcmp.eq.f32.partialorder %v837, 8.507059e+37
    %v839 = vand.u32 %v827, 2147483648
    %v840 = vor.u32 1.1754944e-38, %v839
    %v841 = vsel %vm838, %v840, %v836
    %v842 = vmul.f32 %v824, %v841
    %v843 = vpack.c.bf16 %v842, %v842
    %844 = vrot.lane.b32.xlu0 %v514, 8
    %v845 = vpop.permute.xlu0 %844
    %v847 = vsel %vm134, %v843, 0
    %v850 = vsel %vm188, %v845, 0
    %852 = vmatpush.bf16.msra.mxu0 0
    %853 = vmatpush.bf16.msra.mxu0 0
    %854 = vmatpush.bf16.msra.mxu0 0
    %855 = vmatpush.bf16.msra.mxu0 0
    %856 = vmatpush.bf16.msra.mxu0 0
    %857 = vmatpush.bf16.msra.mxu0 0
    %858 = vmatpush.bf16.msra.mxu0 0
    %859 = vmatpush.bf16.msra.mxu0 %v850
    %860 = vmatmul.bf16.gmra.mxu0 %v847
    %v861 = vpop.f32.mrf.mxu0
    %v862 = vadd.f32 0.0, %v861
    %v863 = vpop.f32.mrf.mxu0
    %864 = vdwg.mxu0
    %v865 = vpack.c.bf16 %v862, %v862
    %v867 = vsel %vm134, %v865, 0
    %869 = vmatpush.bf16.msra.mxu0 0
    %870 = vmatpush.bf16.msra.mxu0 0
    %871 = vmatpush.bf16.msra.mxu0 0
    %872 = vmatpush.bf16.msra.mxu0 0
    %873 = vmatpush.bf16.msra.mxu0 0
    %874 = vmatpush.bf16.msra.mxu0 0
    %875 = vmatpush.bf16.msra.mxu0 0
    %876 = vmatpush.bf16.msra.mxu0 %v493
    %877 = vmatmul.bf16.gmra.mxu0 %v867
    %v878 = vpop.f32.mrf.mxu0
    %v879 = vadd.f32 0.0, %v878
    %v880 = vpop.f32.mrf.mxu0
    %881 = vdwg.mxu0
    %v882 = vadd.f32 %v789, %v879
    %v883 = vadd.f32 %v882, %v510
    %884 = vst.msk [vmem:[#allocation2 + $0x8] sm:$0xff] %vm58, %v883
    // Predicated region
    $region34: #{sentence_word_attention.1} parent=1 // pred_check
      _
    $region35: #{sentence_word_attention.1} parent=1 // pred_check_branch
      %886 = sbr.rel (0) target = $region37
    $region36: #{sentence_word_attention.1} parent=1 // pred_region
      %888 = vsyncadd [#allocation3], 0
      %s889 = sshll.u32 [#allocation2], 4
      %s890 = int_to_ptr.vmem [resolvable:$true] %s889
      %s891 = sshll.u32 %s8, 4
      %s892 = int_to_ptr.hbm [resolvable:$true] %s891
      %897 = dma.vmem_to_hbm [thread:$0]  %s890, 256, %s892, [#allocation3], 128, 128, 8
    $region37: #{sentence_word_attention.1} parent=1 // pred_fallthru
      _
    // Predicated region
    $region38: #{sentence_word_attention.1} parent=1 // pred_check
      _
    $region39: #{sentence_word_attention.1} parent=1 // pred_check_branch
      %899 = sbr.rel (0) target = $region41
    $region40: #{sentence_word_attention.1} parent=1 // pred_region
      %901 = dma.done [#allocation3], 256
    $region41: #{sentence_word_attention.1} parent=1 // pred_fallthru
      _
    %902 = vsyncpa [#allocation3], 1

</llo_original>
